<compile_context>
chip_gen: v6e
topology: v6e:2x2x1
jax: 0.10.0
libtpu: 0.0.40
codegen_flags: <defaults>
</compile_context>

<pallas_src>
import functools

import jax
import jax.numpy as jnp
from jax.experimental import pallas as pl
from jax.experimental.pallas import tpu as pltpu

LANE = 128
ACC_ROWS = 64            # (64, 128) f32 accumulator: 8 vregs -> 8-way ILP
MAX_TILE_ROWS = 4096     # 4096 x 128 f32 = 2 MiB per input block


def _round_up(a, b):
    return ((a + b - 1) // b) * b


def _is_dual_tensorcore_chip():
    # v7x exposes two TensorCores per chip; best-effort detection.
    try:
        kind = jax.devices()[0].device_kind.lower()
    except Exception:
        return False
    return "v7" in kind or "7x" in kind


def _l2_loss_kernel(x_ref, y_ref, o_ref, *, valid_rows, tile_rows,
                    steps_per_core):
    c = pl.program_id(0)   # core-split index (size 1 on single-TC chips)
    i = pl.program_id(1)   # streaming ("arbitrary") axis

    # Output block is resident across the inner axis: zero it once per core.
    @pl.when(i == 0)
    def _():
        o_ref[...] = jnp.zeros_like(o_ref)

    # Widen per tile in VMEM (hidden under the DMA in a mem-bound kernel).
    x = jnp.clip(x_ref[...].astype(jnp.float32), 0.0, 255.0)
    y = jnp.clip(y_ref[...].astype(jnp.float32), 0.0, 255.0)
    d = x - y
    d2 = d * d

    # Logical block index. Redundant steps of the core split re-read a clamped
    # in-bounds block; their logical rows land past `valid_rows` and are
    # zeroed by the masked branch.
    block = c * steps_per_core + i
    is_ragged = (block + 1) * tile_rows > valid_rows

    # Fast path: full blocks pay no iota / compare / select.
    @pl.when(jnp.logical_not(is_ragged))
    def _():
        o_ref[0] += d2.reshape(-1, ACC_ROWS, LANE).sum(axis=0)

    # Ragged / redundant blocks: select (NOT multiply) so NaN/Inf garbage in
    # out-of-range VMEM rows cannot propagate into the accumulator.
    @pl.when(is_ragged)
    def _():
        row_ids = block * tile_rows + jax.lax.broadcasted_iota(
            jnp.int32, d2.shape, 0)
        d2m = jnp.where(row_ids < valid_rows, d2, 0.0)
        o_ref[0] += d2m.reshape(-1, ACC_ROWS, LANE).sum(axis=0)


def l2_loss_image(x, y):
    """Pallas equivalent of the PyTorch L2Loss_image.forward(x, y)."""
    assert x.shape == y.shape, "x and y must have the same shape"
    n_elems = int(x.size)

    xf = jnp.ravel(x)
    yf = jnp.ravel(y)

    rows = n_elems // LANE
    rem = n_elems - rows * LANE

    # <128-element ragged tail: reduce in plain JAX (tiny), avoiding the full
    # HBM read+write a jnp.pad copy of both inputs would cost.
    if rem:
        xt = jnp.clip(xf[rows * LANE:].astype(jnp.float32), 0.0, 255.0)
        yt = jnp.clip(yf[rows * LANE:].astype(jnp.float32), 0.0, 255.0)
        tail_sse = jnp.sum((xt - yt) ** 2)
    else:
        tail_sse = jnp.float32(0.0)

    if rows == 0:
        return tail_sse / n_elems

    x2 = xf[: rows * LANE].reshape(rows, LANE)
    y2 = yf[: rows * LANE].reshape(rows, LANE)

    # Lane-dense tile, multiple of ACC_ROWS (also a multiple of 32, so u8
    # inputs satisfy the (32,128) min tile). Oversized / ragged last blocks
    # are handled by the in-kernel mask.
    tile_rows = min(MAX_TILE_ROWS, _round_up(rows, ACC_ROWS))
    grid_n = pl.cdiv(rows, tile_rows)
    last_block = grid_n - 1

    def call(ncores, dim_semantics):
        steps_per_core = pl.cdiv(grid_n, ncores)

        def in_map(c, i):
            # Clamp so redundant tail steps re-read an in-bounds block; their
            # contribution is zeroed by the in-kernel row mask.
            return (jnp.minimum(c * steps_per_core + i, last_block), 0)

        kernel = functools.partial(
            _l2_loss_kernel,
            valid_rows=rows,
            tile_rows=tile_rows,
            steps_per_core=steps_per_core,
        )
        return pl.pallas_call(
            kernel,
            out_shape=jax.ShapeDtypeStruct((ncores, ACC_ROWS, LANE),
                                           jnp.float32),
            grid_spec=pltpu.PrefetchScalarGridSpec(
                num_scalar_prefetch=0,
                grid=(ncores, steps_per_core),
                in_specs=[
                    pl.BlockSpec((tile_rows, LANE), in_map),
                    pl.BlockSpec((tile_rows, LANE), in_map),
                ],
                out_specs=pl.BlockSpec((1, ACC_ROWS, LANE),
                                       lambda c, i: (c, 0, 0)),
            ),
            compiler_params=pltpu.CompilerParams(
                dimension_semantics=dim_semantics),
        )(x2, y2)

    partials = None
    if grid_n >= 2 and _is_dual_tensorcore_chip():
        # v7x: split the streaming range across both TensorCores. Eager call,
        # so a lowering failure is catchable and we fall back cleanly.
        try:
            partials = call(2, (pltpu.CORE_PARALLEL, pltpu.ARBITRARY))
        except Exception:
            partials = None
    if partials is None:
        partials = call(1, (pltpu.ARBITRARY, pltpu.ARBITRARY))

    # Final tiny cross-lane/core reduce + mean normalization in plain XLA.
    return (jnp.sum(partials) + tail_sse) / n_elems


if __name__ == "__main__":
    key = jax.random.PRNGKey(0)
    kx, ky = jax.random.split(key)

    # Small image-like NCHW inputs; values span beyond [0,255] to exercise clamp.
    shape = (2, 4, 16, 16)
    x = jax.random.uniform(kx, shape, dtype=jnp.float32,
                           minval=-50.0, maxval=300.0)
    y = jax.random.uniform(ky, shape, dtype=jnp.float32,
                           minval=-50.0, maxval=300.0)

    loss = l2_loss_image(x, y)
    jax.block_until_ready(loss)

    ref = jnp.mean((jnp.clip(x, 0.0, 255.0) - jnp.clip(y, 0.0, 255.0)) ** 2)
    assert jnp.allclose(loss, ref, rtol=1e-5, atol=1e-2), (loss, ref)

    # Ragged case: exercises the <128-element tail path and the masked block.
    shape2 = (3, 3, 7, 5)  # 315 elements -> 2 full lane-rows + 59-elem tail
    xr = jax.random.uniform(kx, shape2, dtype=jnp.float32,
                            minval=-50.0, maxval=300.0)
    yr = jax.random.uniform(ky, shape2, dtype=jnp.float32,
                            minval=-50.0, maxval=300.0)
    loss2 = l2_loss_image(xr, yr)
    jax.block_until_ready(loss2)
    ref2 = jnp.mean((jnp.clip(xr, 0.0, 255.0) - jnp.clip(yr, 0.0, 255.0)) ** 2)
    assert jnp.allclose(loss2, ref2, rtol=1e-5, atol=1e-2), (loss2, ref2)

    print("KERNEL_OK")
</pallas_src>

<mosaic_0001>
module attributes {stable_mosaic.version = 11 : i64} {
  func.func @_l2_loss_kernel(%arg0: i32, %arg1: i32, %arg2: memref<64x128xf32, #tpu.memory_space<vmem>>, %arg3: memref<64x128xf32, #tpu.memory_space<vmem>>, %arg4: memref<1x64x128xf32, #tpu.memory_space<vmem>>) attributes {dimension_semantics = [#tpu.dimension_semantics<arbitrary>, #tpu.dimension_semantics<arbitrary>], iteration_bounds = array<i64: 1, 1>, scalar_prefetch = 0 : i64, scratch_operands = 0 : i64, tpu.core_type = #tpu.core_type<tc>, window_params = [{transform_indices = @transform_0, window_bounds = array<i64: 64, 128>}, {transform_indices = @transform_1, window_bounds = array<i64: 64, 128>}, {transform_indices = @transform_2, window_bounds = array<i64: 1, 64, 128>}]} {
    %c0_i32 = arith.constant 0 : i32
    %0 = arith.cmpi eq, %arg1, %c0_i32 : i32
    %1 = arith.extui %0 : i1 to i32
    %c0_i32_0 = arith.constant 0 : i32
    %2 = arith.cmpi ne, %1, %c0_i32_0 : i32
    scf.if %2 {
      %cst_10 = arith.constant 0.000000e+00 : f32
      %25 = vector.broadcast %cst_10 : f32 to vector<1x64x128xf32>
      %c0_11 = arith.constant 0 : index
      %c0_12 = arith.constant 0 : index
      %c0_13 = arith.constant 0 : index
      %26 = vector.load %arg4[%c0_11, %c0_12, %c0_13] : memref<1x64x128xf32, #tpu.memory_space<vmem>>, vector<1x64x128xf32>
      tpu.vector_store %arg4[%c0_11, %c0_12, %c0_13], %25 {strides = array<i32>} : memref<1x64x128xf32, #tpu.memory_space<vmem>>, vector<1x64x128xf32>,
    } else {
    }
    %c0 = arith.constant 0 : index
    %c0_1 = arith.constant 0 : index
    %3 = vector.load %arg2[%c0, %c0_1] : memref<64x128xf32, #tpu.memory_space<vmem>>, vector<64x128xf32>
    %cst = arith.constant 0.000000e+00 : f32
    %cst_2 = arith.constant 2.550000e+02 : f32
    %4 = vector.broadcast %cst : f32 to vector<64x128xf32>
    %5 = arith.maximumf %4, %3 : vector<64x128xf32>
    %6 = vector.broadcast %cst_2 : f32 to vector<64x128xf32>
    %7 = arith.minimumf %6, %5 : vector<64x128xf32>
    %c0_3 = arith.constant 0 : index
    %c0_4 = arith.constant 0 : index
    %8 = vector.load %arg3[%c0_3, %c0_4] : memref<64x128xf32, #tpu.memory_space<vmem>>, vector<64x128xf32>
    %cst_5 = arith.constant 0.000000e+00 : f32
    %cst_6 = arith.constant 2.550000e+02 : f32
    %9 = vector.broadcast %cst_5 : f32 to vector<64x128xf32>
    %10 = arith.maximumf %9, %8 : vector<64x128xf32>
    %11 = vector.broadcast %cst_6 : f32 to vector<64x128xf32>
    %12 = arith.minimumf %11, %10 : vector<64x128xf32>
    %13 = arith.subf %7, %12 : vector<64x128xf32>
    %14 = arith.mulf %13, %13 : vector<64x128xf32>
    %c1_i32 = arith.constant 1 : i32
    %15 = arith.muli %arg0, %c1_i32 : i32
    %16 = arith.addi %15, %arg1 : i32
    %c1_i32_7 = arith.constant 1 : i32
    %17 = arith.addi %16, %c1_i32_7 : i32
    %c64_i32 = arith.constant 64 : i32
    %18 = arith.muli %17, %c64_i32 : i32
    %c16_i32 = arith.constant 16 : i32
    %19 = arith.cmpi sgt, %18, %c16_i32 : i32
    %true = arith.constant true
    %20 = arith.xori %19, %true : i1
    %21 = arith.extui %20 : i1 to i32
    %c0_i32_8 = arith.constant 0 : i32
    %22 = arith.cmpi ne, %21, %c0_i32_8 : i32
    scf.if %22 {
      %c0_10 = arith.constant 0 : index
      %c0_11 = arith.constant 0 : index
      %c0_12 = arith.constant 0 : index
      %25 = vector.load %arg4[%c0_10, %c0_11, %c0_12] : memref<1x64x128xf32, #tpu.memory_space<vmem>>, vector<1x64x128xf32>
      %26 = vector.shape_cast %25 : vector<1x64x128xf32> to vector<64x128xf32>
      %27 = vector.shape_cast %14 : vector<64x128xf32> to vector<1x64x128xf32>
      %cst_13 = arith.constant dense<0.000000e+00> : vector<64x128xf32>
      %28 = vector.multi_reduction <add>, %27, %cst_13 [0] : vector<1x64x128xf32> to vector<64x128xf32>
      %29 = arith.addf %26, %28 : vector<64x128xf32>
      %c0_14 = arith.constant 0 : index
      %c0_15 = arith.constant 0 : index
      %c0_16 = arith.constant 0 : index
      %30 = vector.load %arg4[%c0_14, %c0_15, %c0_16] : memref<1x64x128xf32, #tpu.memory_space<vmem>>, vector<1x64x128xf32>
      %31 = vector.shape_cast %30 : vector<1x64x128xf32> to vector<64x128xf32>
      %32 = vector.shape_cast %29 : vector<64x128xf32> to vector<1x64x128xf32>
      tpu.vector_store %arg4[%c0_14, %c0_15, %c0_16], %32 {strides = array<i32>} : memref<1x64x128xf32, #tpu.memory_space<vmem>>, vector<1x64x128xf32>,
    } else {
    }
    %23 = arith.extui %19 : i1 to i32
    %c0_i32_9 = arith.constant 0 : i32
    %24 = arith.cmpi ne, %23, %c0_i32_9 : i32
    scf.if %24 {
      %c64_i32_10 = arith.constant 64 : i32
      %25 = arith.muli %16, %c64_i32_10 : i32
      %26 = tpu.iota {dimensions = array<i32: 0>} : vector<64x128xi32>
      %27 = vector.broadcast %25 : i32 to vector<64x128xi32>
      %28 = arith.addi %27, %26 : vector<64x128xi32>
      %c16_i32_11 = arith.constant 16 : i32
      %29 = vector.broadcast %c16_i32_11 : i32 to vector<64x128xi32>
      %30 = arith.cmpi slt, %28, %29 : vector<64x128xi32>
      %cst_12 = arith.constant 0.000000e+00 : f32
      %31 = vector.broadcast %cst_12 : f32 to vector<64x128xf32>
      %32 = arith.select %30, %14, %31 : vector<64x128xi1>, vector<64x128xf32>
      %c0_13 = arith.constant 0 : index
      %c0_14 = arith.constant 0 : index
      %c0_15 = arith.constant 0 : index
      %33 = vector.load %arg4[%c0_13, %c0_14, %c0_15] : memref<1x64x128xf32, #tpu.memory_space<vmem>>, vector<1x64x128xf32>
      %34 = vector.shape_cast %33 : vector<1x64x128xf32> to vector<64x128xf32>
      %35 = vector.shape_cast %32 : vector<64x128xf32> to vector<1x64x128xf32>
      %cst_16 = arith.constant dense<0.000000e+00> : vector<64x128xf32>
      %36 = vector.multi_reduction <add>, %35, %cst_16 [0] : vector<1x64x128xf32> to vector<64x128xf32>
      %37 = arith.addf %34, %36 : vector<64x128xf32>
      %c0_17 = arith.constant 0 : index
      %c0_18 = arith.constant 0 : index
      %c0_19 = arith.constant 0 : index
      %38 = vector.load %arg4[%c0_17, %c0_18, %c0_19] : memref<1x64x128xf32, #tpu.memory_space<vmem>>, vector<1x64x128xf32>
      %39 = vector.shape_cast %38 : vector<1x64x128xf32> to vector<64x128xf32>
      %40 = vector.shape_cast %37 : vector<64x128xf32> to vector<1x64x128xf32>
      tpu.vector_store %arg4[%c0_17, %c0_18, %c0_19], %40 {strides = array<i32>} : memref<1x64x128xf32, #tpu.memory_space<vmem>>, vector<1x64x128xf32>,
    } else {
    }
    return
  }
  func.func @transform_0(%arg0: i32, %arg1: i32) -> (i32, i32) {
    %c1_i32 = arith.constant 1 : i32
    %0 = arith.muli %arg0, %c1_i32 : i32
    %1 = arith.addi %0, %arg1 : i32
    %c0_i32 = arith.constant 0 : i32
    %2 = arith.minsi %1, %c0_i32 : i32
    %c0_i32_0 = arith.constant 0 : i32
    %c0_i32_1 = arith.constant 0 : i32
    return %2, %c0_i32_0 : i32, i32
  }
  func.func @transform_1(%arg0: i32, %arg1: i32) -> (i32, i32) {
    %c1_i32 = arith.constant 1 : i32
    %0 = arith.muli %arg0, %c1_i32 : i32
    %1 = arith.addi %0, %arg1 : i32
    %c0_i32 = arith.constant 0 : i32
    %2 = arith.minsi %1, %c0_i32 : i32
    %c0_i32_0 = arith.constant 0 : i32
    %c0_i32_1 = arith.constant 0 : i32
    return %2, %c0_i32_0 : i32, i32
  }
  func.func @transform_2(%arg0: i32, %arg1: i32) -> (i32, i32, i32) {
    %c0_i32 = arith.constant 0 : i32
    %c0_i32_0 = arith.constant 0 : i32
    %c0_i32_1 = arith.constant 0 : i32
    return %arg0, %c0_i32, %c0_i32_0 : i32, i32, i32
  }
}

</mosaic_0001>

<llo_original>
// kernel: tpu_custom_call.1
$region0: #{tpu_custom_call.1}
  #allocation0 [shape = 'u32[]', space=smem, size = 0x4, offset = 0x4, fixed_abs, tag = 'smem constant byte address 0x4 - core index']
  #allocation1 [shape = 'u32[144,128]{1,0:T(1,128)}', space=vmem, size = 0x12000, scoped, tag = 'internal scratch']
  %s0 = inlined_call_operand.hbm [shape: f32[16,128], index: 0, kind: input, shape index: {}]
  %s1 = inlined_call_operand.hbm [shape: f32[16,128], index: 1, kind: input, shape index: {}]
  %s2 = inlined_call_operand.hbm [shape: f32[1,64,128], index: 2, kind: output, shape index: {}]
  %s3 = sld [smem:[#allocation0]]
  $region38: #{tpu_custom_call.1} parent=0
    _
  %s5 = ssub.s32 1, %s3
  %s6 = scalar_select 0, %s5, %s3
  $region1: #{tpu_custom_call.1} parent=0
    #allocation2 [shape = 'u8[32768]{0}', space=vmem, size = 0x8000, scoped, tag = 'input window, operand 0, single buffered']
    #allocation3 [shape = 's32[1]{0}', space=sflag, size = 0x4, scoped, tag = 'scoped memory for tpu_custom_call.1']
    #allocation4 [shape = 's32[1]{0}', space=sflag, size = 0x4, scoped, tag = 'scoped memory for tpu_custom_call.1']
    #allocation5 [shape = 'u8[32768]{0}', space=vmem, size = 0x8000, scoped, tag = 'input window, operand 1, single buffered']
    #allocation6 [shape = 's32[1]{0}', space=sflag, size = 0x4, scoped, tag = 'scoped memory for tpu_custom_call.1']
    #allocation7 [shape = 'u8[32768]{0}', space=vmem, size = 0x8000, scoped, tag = 'output window, operand 0, single buffered']
    %7 = vsyncpa [#allocation3], 0
    %8 = vsyncpa [#allocation6], 0
    %9 = vsyncpa [#allocation4], 0
    // Predicated region
    $region2: #{tpu_custom_call.1} parent=1 // pred_check
      _
    $region3: #{tpu_custom_call.1} parent=1 // pred_check_branch
      %11 = sbr.rel (0) target = $region5
    $region4: #{tpu_custom_call.1} parent=1 // pred_region
      %s12 = sadd.s32 0, 0
      %p13 = scmp.lt.s32.totalorder %s12, 0
      %s14 = scalar_select %p13, %s12, 0
      %s15 = smul.u32 8, %s14
      %s16 = ssub.s32 2, %s15
      %s17 = smul.u32 128, %s16
      %s19 = ssub.s32 1024, %s17
      %20 = vsyncadd [#allocation3], %s19
      %p21 = scmp.ne.s32.totalorder 0, %s17
      %s22 = smul.addr %s15, 128
      %s23 = scalar_lea.hbm %s0, %s22
      %s24 = smul.u32 8, %s16
      %s25 = sshll.u32 [#allocation2], 4
      %s26 = int_to_ptr.vmem [resolvable:$true] %s25
      %s27 = sshll.u32 %s24, 4
      %31 = dma.hbm_to_vmem [thread:$0]  (%p21), %s23, %s27, %s26, [#allocation3], 128, 128, 8
    $region5: #{tpu_custom_call.1} parent=1 // pred_fallthru
      _
    // Predicated region
    $region6: #{tpu_custom_call.1} parent=1 // pred_check
      _
    $region7: #{tpu_custom_call.1} parent=1 // pred_check_branch
      %33 = sbr.rel (0) target = $region9
    $region8: #{tpu_custom_call.1} parent=1 // pred_region
      %s34 = sadd.s32 0, 0
      %p35 = scmp.lt.s32.totalorder %s34, 0
      %s36 = scalar_select %p35, %s34, 0
      %s37 = smul.u32 8, %s36
      %s38 = ssub.s32 2, %s37
      %s39 = smul.u32 128, %s38
      %s41 = ssub.s32 1024, %s39
      %42 = vsyncadd [#allocation6], %s41
      %p43 = scmp.ne.s32.totalorder 0, %s39
      %s44 = smul.addr %s37, 128
      %s45 = scalar_lea.hbm %s1, %s44
      %s46 = smul.u32 8, %s38
      %s47 = sshll.u32 [#allocation5], 4
      %s48 = int_to_ptr.vmem [resolvable:$true] %s47
      %s49 = sshll.u32 %s46, 4
      %53 = dma.hbm_to_vmem [thread:$0]  (%p43), %s45, %s49, %s48, [#allocation6], 128, 128, 8
    $region9: #{tpu_custom_call.1} parent=1 // pred_fallthru
      _
    // Predicated region
    $region10: #{tpu_custom_call.1} parent=1 // pred_check
      _
    $region11: #{tpu_custom_call.1} parent=1 // pred_check_branch
      %55 = sbr.rel (0) target = $region13
    $region12: #{tpu_custom_call.1} parent=1 // pred_region
      %56 = dma.done [#allocation3], 1024
    $region13: #{tpu_custom_call.1} parent=1 // pred_fallthru
      _
    // Predicated region
    $region14: #{tpu_custom_call.1} parent=1 // pred_check
      _
    $region15: #{tpu_custom_call.1} parent=1 // pred_check_branch
      %58 = sbr.rel (0) target = $region17
    $region16: #{tpu_custom_call.1} parent=1 // pred_region
      %59 = dma.done [#allocation6], 1024
    $region17: #{tpu_custom_call.1} parent=1 // pred_fallthru
      _
    %s60 = sadd.s32 0, 0
    %p61 = scmp.lt.s32.totalorder %s60, 0
    %s62 = scalar_select %p61, %s60, 0
    %s63 = smul.u32 8, %s62
    %s64 = ssub.s32 2, %s63
    %s65 = smul.u32 128, %s64
    %s66 = sadd.s32 0, 0
    %p67 = scmp.lt.s32.totalorder %s66, 0
    %s68 = scalar_select %p67, %s66, 0
    %s69 = smul.u32 8, %s68
    %s70 = ssub.s32 2, %s69
    %s71 = smul.u32 128, %s70
    %p72 = scmp.eq.s32.totalorder 0, 0
    // Predicated region
    $region18: #{tpu_custom_call.1} parent=1 // pred_check
      %p73 = pneg %p72
    $region19: #{tpu_custom_call.1} parent=1 // pred_check_branch
      %75 = sbr.rel (%p73) target = $region21
    $region20: #{tpu_custom_call.1} parent=1 // pred_region
      %76 = vst [vmem:[#allocation7] sm:$0xff] 0.0
      %77 = vst [vmem:[#allocation7 + $0x8] sm:$0xff] 0.0
      %78 = vst [vmem:[#allocation7 + $0x10] sm:$0xff] 0.0
      %79 = vst [vmem:[#allocation7 + $0x18] sm:$0xff] 0.0
      %80 = vst [vmem:[#allocation7 + $0x20] sm:$0xff] 0.0
      %81 = vst [vmem:[#allocation7 + $0x28] sm:$0xff] 0.0
      %82 = vst [vmem:[#allocation7 + $0x30] sm:$0xff] 0.0
      %83 = vst [vmem:[#allocation7 + $0x38] sm:$0xff] 0.0
    $region21: #{tpu_custom_call.1} parent=1 // pred_fallthru
      _
    %v84 = vld [vmem:[#allocation2] sm:$0xff]
    %v85 = vld [vmem:[#allocation2 + $0x8] sm:$0xff]
    %v86 = vld [vmem:[#allocation2 + $0x10] sm:$0xff]
    %v87 = vld [vmem:[#allocation2 + $0x18] sm:$0xff]
    %v88 = vld [vmem:[#allocation2 + $0x20] sm:$0xff]
    %v89 = vld [vmem:[#allocation2 + $0x28] sm:$0xff]
    %v90 = vld [vmem:[#allocation2 + $0x30] sm:$0xff]
    %v91 = vld [vmem:[#allocation2 + $0x38] sm:$0xff]
    %v92 = vmax.f32 %v84, 0.0
    %v93 = vmax.f32 %v85, 0.0
    %v94 = vmax.f32 %v86, 0.0
    %v95 = vmax.f32 %v87, 0.0
    %v96 = vmax.f32 %v88, 0.0
    %v97 = vmax.f32 %v89, 0.0
    %v98 = vmax.f32 %v90, 0.0
    %v99 = vmax.f32 %v91, 0.0
    %v100 = vmin.f32 %v92, 255.0
    %v101 = vmin.f32 %v93, 255.0
    %v102 = vmin.f32 %v94, 255.0
    %v103 = vmin.f32 %v95, 255.0
    %v104 = vmin.f32 %v96, 255.0
    %v105 = vmin.f32 %v97, 255.0
    %v106 = vmin.f32 %v98, 255.0
    %v107 = vmin.f32 %v99, 255.0
    %v108 = vld [vmem:[#allocation5] sm:$0xff]
    %v109 = vld [vmem:[#allocation5 + $0x8] sm:$0xff]
    %v110 = vld [vmem:[#allocation5 + $0x10] sm:$0xff]
    %v111 = vld [vmem:[#allocation5 + $0x18] sm:$0xff]
    %v112 = vld [vmem:[#allocation5 + $0x20] sm:$0xff]
    %v113 = vld [vmem:[#allocation5 + $0x28] sm:$0xff]
    %v114 = vld [vmem:[#allocation5 + $0x30] sm:$0xff]
    %v115 = vld [vmem:[#allocation5 + $0x38] sm:$0xff]
    %v116 = vmax.f32 %v108, 0.0
    %v117 = vmax.f32 %v109, 0.0
    %v118 = vmax.f32 %v110, 0.0
    %v119 = vmax.f32 %v111, 0.0
    %v120 = vmax.f32 %v112, 0.0
    %v121 = vmax.f32 %v113, 0.0
    %v122 = vmax.f32 %v114, 0.0
    %v123 = vmax.f32 %v115, 0.0
    %v124 = vmin.f32 %v116, 255.0
    %v125 = vmin.f32 %v117, 255.0
    %v126 = vmin.f32 %v118, 255.0
    %v127 = vmin.f32 %v119, 255.0
    %v128 = vmin.f32 %v120, 255.0
    %v129 = vmin.f32 %v121, 255.0
    %v130 = vmin.f32 %v122, 255.0
    %v131 = vmin.f32 %v123, 255.0
    %v132 = vsub.f32 %v100, %v124
    %v133 = vsub.f32 %v101, %v125
    %v134 = vsub.f32 %v102, %v126
    %v135 = vsub.f32 %v103, %v127
    %v136 = vsub.f32 %v104, %v128
    %v137 = vsub.f32 %v105, %v129
    %v138 = vsub.f32 %v106, %v130
    %v139 = vsub.f32 %v107, %v131
    %v140 = vmul.f32 %v132, %v132
    %v141 = vmul.f32 %v133, %v133
    %v142 = vmul.f32 %v134, %v134
    %v143 = vmul.f32 %v135, %v135
    %v144 = vmul.f32 %v136, %v136
    %v145 = vmul.f32 %v137, %v137
    %v146 = vmul.f32 %v138, %v138
    %v147 = vmul.f32 %v139, %v139
    %s148 = sadd.s32 0, 0
    %s149 = sadd.s32 %s148, 1
    %s150 = smul.u32 %s149, 64
    %p151 = scmp.gt.s32.totalorder %s150, 16
    %p152 = scmp.le.s32.totalorder %s150, 16
    // Predicated region
    $region22: #{tpu_custom_call.1} parent=1 // pred_check
      %p153 = pneg %p152
    $region23: #{tpu_custom_call.1} parent=1 // pred_check_branch
      %155 = sbr.rel (%p153) target = $region25
    $region24: #{tpu_custom_call.1} parent=1 // pred_region
      %v156 = vld [vmem:[#allocation7] sm:$0xff]
      %v157 = vld [vmem:[#allocation7 + $0x8] sm:$0xff]
      %v158 = vld [vmem:[#allocation7 + $0x10] sm:$0xff]
      %v159 = vld [vmem:[#allocation7 + $0x18] sm:$0xff]
      %v160 = vld [vmem:[#allocation7 + $0x20] sm:$0xff]
      %v161 = vld [vmem:[#allocation7 + $0x28] sm:$0xff]
      %v162 = vld [vmem:[#allocation7 + $0x30] sm:$0xff]
      %v163 = vld [vmem:[#allocation7 + $0x38] sm:$0xff]
      %v164 = vadd.f32 %v140, 0.0
      %v165 = vadd.f32 %v141, 0.0
      %v166 = vadd.f32 %v142, 0.0
      %v167 = vadd.f32 %v143, 0.0
      %v168 = vadd.f32 %v144, 0.0
      %v169 = vadd.f32 %v145, 0.0
      %v170 = vadd.f32 %v146, 0.0
      %v171 = vadd.f32 %v147, 0.0
      %v172 = vadd.f32 %v156, %v164
      %v173 = vadd.f32 %v157, %v165
      %v174 = vadd.f32 %v158, %v166
      %v175 = vadd.f32 %v159, %v167
      %v176 = vadd.f32 %v160, %v168
      %v177 = vadd.f32 %v161, %v169
      %v178 = vadd.f32 %v162, %v170
      %v179 = vadd.f32 %v163, %v171
      %180 = vst [vmem:[#allocation7] sm:$0xff] %v172
      %181 = vst [vmem:[#allocation7 + $0x8] sm:$0xff] %v173
      %182 = vst [vmem:[#allocation7 + $0x10] sm:$0xff] %v174
      %183 = vst [vmem:[#allocation7 + $0x18] sm:$0xff] %v175
      %184 = vst [vmem:[#allocation7 + $0x20] sm:$0xff] %v176
      %185 = vst [vmem:[#allocation7 + $0x28] sm:$0xff] %v177
      %186 = vst [vmem:[#allocation7 + $0x30] sm:$0xff] %v178
      %187 = vst [vmem:[#allocation7 + $0x38] sm:$0xff] %v179
    $region25: #{tpu_custom_call.1} parent=1 // pred_fallthru
      _
    // Predicated region
    $region26: #{tpu_custom_call.1} parent=1 // pred_check
      %p188 = pneg %p151
    $region27: #{tpu_custom_call.1} parent=1 // pred_check_branch
      %190 = sbr.rel (%p188) target = $region29
    $region28: #{tpu_custom_call.1} parent=1 // pred_region
      %s191 = smul.u32 %s148, 64
      %v192 = vlaneseq
      %v193 = vshrl.u32 %v192, 7
      %v194 = vadd.s32 %v193, 8
      %v195 = vadd.s32 %v193, 16
      %v196 = vadd.s32 %v193, 24
      %v197 = vadd.s32 %v193, 32
      %v198 = vadd.s32 %v193, 40
      %v199 = vadd.s32 %v193, 48
      %v200 = vadd.s32 %v193, 56
      %v201 = vstv %s191
      %v202 = vadd.s32 %v201, %v193
      %v203 = vadd.s32 %v201, %v194
      %v204 = vadd.s32 %v201, %v195
      %v205 = vadd.s32 %v201, %v196
      %v206 = vadd.s32 %v201, %v197
      %v207 = vadd.s32 %v201, %v198
      %v208 = vadd.s32 %v201, %v199
      %v209 = vadd.s32 %v201, %v200
      %vm210 = vcmp.lt.s32.totalorder %v202, 16
      %vm211 = vcmp.lt.s32.totalorder %v203, 16
      %vm212 = vcmp.lt.s32.totalorder %v204, 16
      %vm213 = vcmp.lt.s32.totalorder %v205, 16
      %vm214 = vcmp.lt.s32.totalorder %v206, 16
      %vm215 = vcmp.lt.s32.totalorder %v207, 16
      %vm216 = vcmp.lt.s32.totalorder %v208, 16
      %vm217 = vcmp.lt.s32.totalorder %v209, 16
      %v218 = vsel %vm210, %v140, 0.0
      %v219 = vsel %vm211, %v141, 0.0
      %v220 = vsel %vm212, %v142, 0.0
      %v221 = vsel %vm213, %v143, 0.0
      %v222 = vsel %vm214, %v144, 0.0
      %v223 = vsel %vm215, %v145, 0.0
      %v224 = vsel %vm216, %v146, 0.0
      %v225 = vsel %vm217, %v147, 0.0
      %v226 = vld [vmem:[#allocation7] sm:$0xff]
      %v227 = vld [vmem:[#allocation7 + $0x8] sm:$0xff]
      %v228 = vld [vmem:[#allocation7 + $0x10] sm:$0xff]
      %v229 = vld [vmem:[#allocation7 + $0x18] sm:$0xff]
      %v230 = vld [vmem:[#allocation7 + $0x20] sm:$0xff]
      %v231 = vld [vmem:[#allocation7 + $0x28] sm:$0xff]
      %v232 = vld [vmem:[#allocation7 + $0x30] sm:$0xff]
      %v233 = vld [vmem:[#allocation7 + $0x38] sm:$0xff]
      %v234 = vadd.f32 %v218, 0.0
      %v235 = vadd.f32 %v219, 0.0
      %v236 = vadd.f32 %v220, 0.0
      %v237 = vadd.f32 %v221, 0.0
      %v238 = vadd.f32 %v222, 0.0
      %v239 = vadd.f32 %v223, 0.0
      %v240 = vadd.f32 %v224, 0.0
      %v241 = vadd.f32 %v225, 0.0
      %v242 = vadd.f32 %v226, %v234
      %v243 = vadd.f32 %v227, %v235
      %v244 = vadd.f32 %v228, %v236
      %v245 = vadd.f32 %v229, %v237
      %v246 = vadd.f32 %v230, %v238
      %v247 = vadd.f32 %v231, %v239
      %v248 = vadd.f32 %v232, %v240
      %v249 = vadd.f32 %v233, %v241
      %250 = vst [vmem:[#allocation7] sm:$0xff] %v242
      %251 = vst [vmem:[#allocation7 + $0x8] sm:$0xff] %v243
      %252 = vst [vmem:[#allocation7 + $0x10] sm:$0xff] %v244
      %253 = vst [vmem:[#allocation7 + $0x18] sm:$0xff] %v245
      %254 = vst [vmem:[#allocation7 + $0x20] sm:$0xff] %v246
      %255 = vst [vmem:[#allocation7 + $0x28] sm:$0xff] %v247
      %256 = vst [vmem:[#allocation7 + $0x30] sm:$0xff] %v248
      %257 = vst [vmem:[#allocation7 + $0x38] sm:$0xff] %v249
    $region29: #{tpu_custom_call.1} parent=1 // pred_fallthru
      _
    // Predicated region
    $region30: #{tpu_custom_call.1} parent=1 // pred_check
      _
    $region31: #{tpu_custom_call.1} parent=1 // pred_check_branch
      %259 = sbr.rel (0) target = $region33
    $region32: #{tpu_custom_call.1} parent=1 // pred_region
      %s261 = ssub.s32 1024, 1024
      %262 = vsyncadd [#allocation4], %s261
      %s263 = sshll.u32 [#allocation7], 4
      %s264 = int_to_ptr.vmem [resolvable:$true] %s263
      %269 = dma.vmem_to_hbm [thread:$0]  %s264, 1024, %s2, [#allocation4], 128, 128, 8
    $region33: #{tpu_custom_call.1} parent=1 // pred_fallthru
      _
    // Predicated region
    $region34: #{tpu_custom_call.1} parent=1 // pred_check
      _
    $region35: #{tpu_custom_call.1} parent=1 // pred_check_branch
      %271 = sbr.rel (0) target = $region37
    $region36: #{tpu_custom_call.1} parent=1 // pred_region
      %272 = dma.done [#allocation4], 1024
    $region37: #{tpu_custom_call.1} parent=1 // pred_fallthru
      _
    %273 = vsyncpa [#allocation3], 1
    %274 = vsyncpa [#allocation6], 1
    %275 = vsyncpa [#allocation4], 1

</llo_original>
